<compile_context>
chip_gen: v7x
topology: tpu7x:2x2x1
jax: 0.10.0
libtpu: 0.0.40
codegen_flags: <defaults>
</compile_context>

<pallas_src>
import numpy as np
import jax
import jax.numpy as jnp
from jax.experimental import pallas as pl
from jax.experimental.pallas import tpu as pltpu


# ----------------------------------------------------------------------------
# Deterministic FEM setup (mirrors rectangleMesh / TriMesh2D / _assemble with
# diffusion_coeff == 1 and order-1 quadrature, so K == 1 per element).
# ----------------------------------------------------------------------------
def rectangle_mesh(x_range=(0.0, 1.0), y_range=(0.0, 1.0), h=0.25):
    nx = int(round((x_range[1] - x_range[0]) / h)) + 1
    ny = int(round((y_range[1] - y_range[0]) / h)) + 1
    xs = np.linspace(x_range[0], x_range[1], nx)
    ys = np.linspace(y_range[0], y_range[1], ny)
    X, Y = np.meshgrid(xs, ys, indexing="xy")
    node = np.stack([X.ravel(), Y.ravel()], axis=-1).astype(np.float64)  # (nNode, 2)

    def nid(i, j):  # i indexes y-rows, j indexes x-cols
        return i * nx + j

    elems = []
    for i in range(ny - 1):
        for j in range(nx - 1):
            v00, v10 = nid(i, j), nid(i, j + 1)
            v01, v11 = nid(i + 1, j), nid(i + 1, j + 1)
            elems.append([v00, v10, v11])   # CCW
            elems.append([v00, v11, v01])   # CCW
    elem = np.asarray(elems, dtype=np.int64)  # (nElem, 3)
    return node, elem


def assemble_A_int(domain=((0.0, 1.0), (0.0, 1.0)), h=0.25):
    node, elem = rectangle_mesh(domain[0], domain[1], h)
    nNode = node.shape[0]

    p1, p2, p3 = node[elem[:, 0]], node[elem[:, 1]], node[elem[:, 2]]
    d1, d2 = p2 - p1, p3 - p1
    area = 0.5 * (d1[:, 0] * d2[:, 1] - d1[:, 1] * d2[:, 0])  # signed, > 0 (CCW)

    # gradLambda[n, d, i] : gradient of barycentric coordinate i on element n
    ve = np.stack([p3 - p2, p1 - p3, p2 - p1], axis=-1)        # (nElem, 2, 3)
    gradLambda = np.empty_like(ve)
    gradLambda[:, 0, :] = -ve[:, 1, :]
    gradLambda[:, 1, :] = ve[:, 0, :]
    gradLambda /= (2.0 * area)[:, None, None]

    # diffusion_coeff == 1, quadrature weights sum to 1  =>  K[n] == 1
    K = np.ones(elem.shape[0], dtype=np.float64)
    local = np.einsum("n,n,ndi,ndj->nij", K, np.abs(area), gradLambda, gradLambda)

    A = np.zeros((nNode, nNode), dtype=np.float64)
    I = np.repeat(elem[:, :, None], 3, axis=2)
    J = np.repeat(elem[:, None, :], 3, axis=1)
    np.add.at(A, (I.ravel(), J.ravel()), local.ravel())

    x, y = node[:, 0], node[:, 1]
    isBd = (np.isclose(x, domain[0][0]) | np.isclose(x, domain[0][1]) |
            np.isclose(y, domain[1][0]) | np.isclose(y, domain[1][1]))
    freeNode = ~isBd
    A_int = A[np.ix_(freeNode, freeNode)]                       # (nDof, nDof)
    return A_int


# ----------------------------------------------------------------------------
# Pallas kernel: y_rows = u_rows @ A^T   (lane-dense output, single MXU pass)
# ----------------------------------------------------------------------------
def _matvec_row_kernel(u_rows_ref, at_ref, o_ref):
    # u_rows_ref: (r_pad, k_pad), at_ref: (k_pad, n_pad), o_ref: (r_pad, n_pad)
    o_ref[...] = jnp.dot(u_rows_ref[...], at_ref[...],
                         preferred_element_type=jnp.float32)


def _round_up(x, m):
    return ((x + m - 1) // m) * m


def make_poisson_forward(A_int_np):
    """Build a jitted forward: u (nDof, B) -> A_int @ u  (nDof, B).

    The constant operator A_int is transposed and padded exactly once
    (host-side), then closed over; only u is padded per call.
    """
    n = int(A_int_np.shape[0])
    k_pad = max(8, _round_up(n, 8))      # contraction dim -> sublane tile
    n_pad = max(128, _round_up(n, 128))  # output dim -> full 128-lane stores

    A_T_pad_np = np.zeros((k_pad, n_pad), dtype=np.float32)
    A_T_pad_np[:n, :n] = np.asarray(A_int_np, dtype=np.float64).T.astype(np.float32)
    A_T_pad = jnp.asarray(A_T_pad_np)    # constant, built once

    @jax.jit
    def forward(u):
        # u: (n, B) column vector(s); B = 1 matches the module's forward.
        B = u.shape[1]
        r_pad = max(8, _round_up(B, 8))  # pad RHS rows to sublane tile
        u_rows = jnp.zeros((r_pad, k_pad), jnp.float32)
        u_rows = u_rows.at[:B, :n].set(u.astype(jnp.float32).T)

        y_rows = pl.pallas_call(
            _matvec_row_kernel,
            out_shape=jax.ShapeDtypeStruct((r_pad, n_pad), jnp.float32),
            in_specs=[
                pl.BlockSpec(memory_space=pltpu.MemorySpace.VMEM),
                pl.BlockSpec(memory_space=pltpu.MemorySpace.VMEM),
            ],
            out_specs=pl.BlockSpec(memory_space=pltpu.MemorySpace.VMEM),
            cost_estimate=pl.CostEstimate(
                flops=2 * r_pad * k_pad * n_pad,
                transcendentals=0,
                bytes_accessed=4 * (r_pad * k_pad + k_pad * n_pad + r_pad * n_pad),
            ),
        )(u_rows, A_T_pad)

        # Back to column-vector layout (tiny wrapper-side transpose).
        return y_rows[:B, :n].T

    return forward


# ----------------------------------------------------------------------------
if __name__ == "__main__":
    # Module defaults: domain = unit square, h = 1/4  ->  nDof = 9
    A_int_np = assemble_A_int(domain=((0.0, 1.0), (0.0, 1.0)), h=1.0 / 4.0)
    nDof = A_int_np.shape[0]
    A_int = jnp.asarray(A_int_np, dtype=jnp.float32)

    poisson_forward = make_poisson_forward(A_int_np)

    # forward() input: u of shape (nDof, 1)
    key = jax.random.PRNGKey(0)
    u = jax.random.normal(key, (nDof, 1), dtype=jnp.float32)

    y = poisson_forward(u)
    y = jax.block_until_ready(y)

    # Reference check (plain JAX dense matvec == sparse.mm semantics)
    y_ref = A_int @ u
    assert y.shape == (nDof, 1)
    np.testing.assert_allclose(np.asarray(y), np.asarray(y_ref),
                               rtol=1e-5, atol=1e-5)
    print("KERNEL_OK")
</pallas_src>

<mosaic_0001>
module attributes {stable_mosaic.version = 11 : i64} {
  func.func @_matvec_row_kernel(%arg0: memref<8x16xf32, #tpu.memory_space<vmem>>, %arg1: memref<16x128xf32, #tpu.memory_space<vmem>>, %arg2: memref<8x128xf32, #tpu.memory_space<vmem>>) attributes {dimension_semantics = [], scalar_prefetch = 0 : i64, scratch_operands = 0 : i64, tpu.core_type = #tpu.core_type<tc>} {
    %c0 = arith.constant 0 : index
    %c0_0 = arith.constant 0 : index
    %0 = vector.load %arg0[%c0, %c0_0] : memref<8x16xf32, #tpu.memory_space<vmem>>, vector<8x16xf32>
    %c0_1 = arith.constant 0 : index
    %c0_2 = arith.constant 0 : index
    %1 = vector.load %arg1[%c0_1, %c0_2] : memref<16x128xf32, #tpu.memory_space<vmem>>, vector<16x128xf32>
    %cst = arith.constant dense<0.000000e+00> : vector<8x128xf32>
    %2 = tpu.matmul %0, %1, %cst {dimension_numbers = #tpu.dot_dimension_numbers<[1], [0], [0], [1], [0, 0, 1, 1], [], []>} : vector<8x16xf32>, vector<16x128xf32>, vector<8x128xf32> -> vector<8x128xf32>
    %c0_3 = arith.constant 0 : index
    %c0_4 = arith.constant 0 : index
    %3 = vector.load %arg2[%c0_3, %c0_4] : memref<8x128xf32, #tpu.memory_space<vmem>>, vector<8x128xf32>
    tpu.vector_store %arg2[%c0_3, %c0_4], %2 {strides = array<i32>} : memref<8x128xf32, #tpu.memory_space<vmem>>, vector<8x128xf32>,
    return
  }
}

</mosaic_0001>

<llo_original>
// kernel: forward.1
$region0: #{forward.1}
  #allocation0 [shape = 'u32[]', space=smem, size = 0x4, offset = 0x4, fixed_abs, tag = 'smem constant byte address 0x4 - core index']
  #allocation1 [shape = 'u32[144,128]{1,0:T(1,128)}', space=vmem, size = 0x12000, scoped, tag = 'internal scratch']
  %s0 = inlined_call_operand.vmem [shape: f32[8,16], index: 0, kind: input, shape index: {}]
  %s1 = inlined_call_operand.vmem [shape: f32[16,128], index: 1, kind: input, shape index: {}]
  %s2 = inlined_call_operand.vmem [shape: f32[8,128], index: 2, kind: output, shape index: {}]
  %s3 = sld [smem:[#allocation0]]
  $region18: #{forward.1} parent=0
    _
  %s5 = ssub.s32 1, %s3
  %s6 = scalar_select 0, %s5, %s3
  // Predicated region
  $region2: #{forward.1} parent=0 // pred_check
    _
  $region3: #{forward.1} parent=0 // pred_check_branch
    %8 = sbr.rel (0) target = $region5
  $region4: #{forward.1} parent=0 // pred_region
    _
  $region5: #{forward.1} parent=0 // pred_fallthru
    _
  // Predicated region
  $region6: #{forward.1} parent=0 // pred_check
    _
  $region7: #{forward.1} parent=0 // pred_check_branch
    %10 = sbr.rel (0) target = $region9
  $region8: #{forward.1} parent=0 // pred_region
    _
  $region9: #{forward.1} parent=0 // pred_fallthru
    _
  %v11 = vld [vmem:[%s0] sm:$0xff]
  %v12 = vld [vmem:[%s1] sm:$0xff]
  %v13 = vld [vmem:[%s1 + $0x8] sm:$0xff]
  %vm14 = vcmask 130048
  %v16 = vsel %vm14, %v11, 0
  %18 = vmatprep.subr.mxu0 0.0
  %19 = vmatpush1.msra.mxu0 %v12
  %20 = vmatprep.subr.mxu0 0.0
  %21 = vmatpush1.msra.mxu0 %v13
  %22 = vmatprep.subr.mxu0 0.0
  %23 = vmatpush1.msra.mxu0 0.0
  %24 = vmatprep.subr.mxu0 0.0
  %25 = vmatpush1.msra.mxu0 0.0
  %26 = vmatprep.subr.mxu0 0.0
  %27 = vmatpush1.msra.mxu0 0.0
  %28 = vmatprep.subr.mxu0 0.0
  %29 = vmatpush1.msra.mxu0 0.0
  %30 = vmatprep.subr.mxu0 0.0
  %31 = vmatpush1.msra.mxu0 0.0
  %32 = vmatprep.subr.mxu0 0.0
  %33 = vmatpush1.msra.mxu0 0.0
  %34 = vmatprep.subr.mxu0 0.0
  %35 = vmatpush1.msra.mxu0 0.0
  %36 = vmatprep.subr.mxu0 0.0
  %37 = vmatpush1.msra.mxu0 0.0
  %38 = vmatprep.subr.mxu0 0.0
  %39 = vmatpush1.msra.mxu0 0.0
  %40 = vmatprep.subr.mxu0 0.0
  %41 = vmatpush1.msra.mxu0 0.0
  %42 = vmatprep.subr.mxu0 0.0
  %43 = vmatpush1.msra.mxu0 0.0
  %44 = vmatprep.subr.mxu0 0.0
  %45 = vmatpush1.msra.mxu0 0.0
  %46 = vmatprep.subr.mxu0 0.0
  %47 = vmatpush1.msra.mxu0 0.0
  %48 = vmatprep.subr.mxu0 0.0
  %49 = vmatpush1.msra.mxu0 0.0
  %50 = vmatprep.subr.mxu0 0.0
  %51 = vmatpush1.msra.mxu0 0.0
  %52 = vmatprep.subr.mxu0 0.0
  %53 = vmatpush1.msra.mxu0 0.0
  %54 = vmatprep.subr.mxu0 0.0
  %55 = vmatpush1.msra.mxu0 0.0
  %56 = vmatprep.subr.mxu0 0.0
  %57 = vmatpush1.msra.mxu0 0.0
  %58 = vmatprep.subr.mxu0 0.0
  %59 = vmatpush1.msra.mxu0 0.0
  %60 = vmatprep.subr.mxu0 0.0
  %61 = vmatpush1.msra.mxu0 0.0
  %62 = vmatprep.subr.mxu0 0.0
  %63 = vmatpush1.msra.mxu0 0.0
  %64 = vmatprep.subr.mxu0 0.0
  %65 = vmatpush1.msra.mxu0 0.0
  %66 = vmatprep.subr.mxu0 0.0
  %67 = vmatpush1.msra.mxu0 0.0
  %68 = vmatprep.subr.mxu0 0.0
  %69 = vmatpush1.msra.mxu0 0.0
  %70 = vmatprep.subr.mxu0 0.0
  %71 = vmatpush1.msra.mxu0 0.0
  %72 = vmatprep.subr.mxu0 0.0
  %73 = vmatpush1.msra.mxu0 0.0
  %74 = vmatprep.subr.mxu0 0.0
  %75 = vmatpush1.msra.mxu0 0.0
  %76 = vmatprep.subr.mxu0 0.0
  %77 = vmatpush1.msra.mxu0 0.0
  %78 = vmatprep.subr.mxu0 0.0
  %79 = vmatpush1.msra.mxu0 0.0
  %80 = vmatprep.subr.mxu0 0.0
  %81 = vmatpush1.msra.mxu0 0.0
  %82 = vmatprep.mubr.f32.mxu0 0.0
  %83 = vmatmul.mubr.f32.gmra.mrb[0].mxu0 %v16
  %v84 = vpop.f32.mrb[0].mxu0
  %v85 = vadd.f32 0.0, %v84
  %v86 = vpop.f32.mrb[0].mxu0
  %87 = vdwg.mxu0
  %88 = vst [vmem:[%s2] sm:$0xff] %v85
  // Predicated region
  $region10: #{forward.1} parent=0 // pred_check
    _
  $region11: #{forward.1} parent=0 // pred_check_branch
    %90 = sbr.rel (0) target = $region13
  $region12: #{forward.1} parent=0 // pred_region
    _
  $region13: #{forward.1} parent=0 // pred_fallthru
    _
  // Predicated region
  $region14: #{forward.1} parent=0 // pred_check
    _
  $region15: #{forward.1} parent=0 // pred_check_branch
    %92 = sbr.rel (0) target = $region17
  $region16: #{forward.1} parent=0 // pred_region
    _
  $region17: #{forward.1} parent=0 // pred_fallthru
    _

</llo_original>
